<compile_context>
chip_gen: v7x
topology: tpu7x:2x2x1
jax: 0.10.0
libtpu: 0.0.40
codegen_flags: <defaults>
</compile_context>

<pallas_src>
import math
import numpy as np
import jax
import jax.numpy as jnp
from jax.experimental import pallas as pl
from jax.experimental.pallas import tpu as pltpu


# ----------------------------------------------------------------------------
# Config (small shapes consistent with the module)
# ----------------------------------------------------------------------------
B = 2
C_IN = 32            # channel_in
C_OUT = 32           # channel_out (must equal channel_in for the residual add)
TOPIC_C = 16         # topic_channel
K = 4                # knn k
GROUPS = 4
WIDTH_GROUP = 4
WIDTH = WIDTH_GROUP * GROUPS        # 16
GS = WIDTH // GROUPS                # group size
MAX_SEG_LEN = 200                   # default of get_temporal_graph
MAX_SEG_NUM = 2
N = MAX_SEG_NUM * MAX_SEG_LEN // 4  # 100 graph nodes (valid)
NPAD = 128                          # lane-padded node axis
N_TAPS = 3                          # temporal neighbor taps
CIN2 = 2 * C_IN + TOPIC_C           # sconvs input channels (80)


# ----------------------------------------------------------------------------
# Pallas kernel 1: pairwise (negative squared) distances for knn.
# Takes x in BOTH (N, C) and (C, N) layouts so the (128,32)x(32,128) product is
# fully MXU-native (no in-kernel transposes); padded lanes are masked to -1e30
# so they never enter any real node's top-k.
# ----------------------------------------------------------------------------
def make_pairwise_kernel(n_valid, npad):
    def kernel(xnc_ref, xcn_ref, d_ref):
        xnc = xnc_ref[0]                                    # (NPAD, C)
        xcn = xcn_ref[0]                                    # (C, NPAD)
        inner = jnp.dot(xnc, xcn, preferred_element_type=jnp.float32)  # (NPAD, NPAD)
        sq_row = jnp.sum(xcn * xcn, axis=0, keepdims=True)  # (1, NPAD)  sublane reduce
        sq_col = jnp.sum(xnc * xnc, axis=1, keepdims=True)  # (NPAD, 1)  lane reduce
        d = 2.0 * inner - sq_row - sq_col
        lane = jax.lax.broadcasted_iota(jnp.int32, (npad, npad), 1)
        d_ref[0] = jnp.where(lane < n_valid, d, -1e30)
    return kernel


def pairwise_distance(x_nc, x_cn):
    b, npad, c = x_nc.shape
    return pl.pallas_call(
        make_pairwise_kernel(N, npad),
        out_shape=jax.ShapeDtypeStruct((b, npad, npad), jnp.float32),
        grid=(b,),
        in_specs=[pl.BlockSpec((1, npad, c), lambda i: (i, 0, 0)),
                  pl.BlockSpec((1, c, npad), lambda i: (i, 0, 0))],
        out_specs=pl.BlockSpec((1, npad, npad), lambda i: (i, 0, 0)),
        compiler_params=pltpu.CompilerParams(dimension_semantics=("parallel",)),
    )(x_nc, x_cn)


# ----------------------------------------------------------------------------
# Pallas kernel 2: fused tconvs + sconvs + max + residual + relu (per batch)
# ----------------------------------------------------------------------------
def make_ego_kernel(width, c_out, n_taps, k, npad, topic_c):
    f32 = jnp.float32
    bf16 = jnp.bfloat16

    def kernel(xt_ref, feat_ref, idn_ref, topic_ref,
               tW1, tb1, tW2, tb2, tW3, tb3,
               sW1n, sW1c, sW1t, sb1, sW2, sb2, sW3, sb3,
               out_ref):
        xt = xt_ref[0]        # (C_IN, n_taps*npad)  bf16
        feat = feat_ref[0]    # (C_IN, k*npad)       bf16
        idn = idn_ref[0]      # (C_IN, npad)         f32
        topic = topic_ref[0]  # (topic_c, 1)         f32

        # ---- temporal path: one wide 1x1 conv over all taps, then the grouped
        # (1,3) conv as 3 lane-aligned slice matmuls accumulated in f32.
        h1 = jnp.maximum(
            jnp.dot(tW1[...], xt, preferred_element_type=f32) + tb1[...], 0.0)
        h2 = jnp.dot(tW2[0], h1[:, 0:npad].astype(bf16), preferred_element_type=f32)
        for j in range(1, n_taps):
            h2 = h2 + jnp.dot(tW2[j], h1[:, j * npad:(j + 1) * npad].astype(bf16),
                              preferred_element_type=f32)
        h2 = jnp.maximum(h2 + tb2[...], 0.0)                              # (W, npad)
        tout = jnp.dot(tW3[...], h2.astype(bf16),
                       preferred_element_type=f32) + tb3[...]             # (c_out, npad)

        # ---- spatial path: one wide matmul over all K neighbor slots; the
        # center contribution is computed once and tiled across the slots.
        nbr = jnp.dot(sW1n[...], feat, preferred_element_type=f32)        # (W, k*npad)
        ctr = jnp.dot(sW1c[...], idn.astype(bf16),
                      preferred_element_type=f32) + sb1[...]              # (W, npad)
        ctr_tiled = jnp.concatenate([ctr] * k, axis=1)                    # (W, k*npad)
        g1 = jnp.maximum(nbr + ctr_tiled, 0.0)
        g2 = jnp.maximum(jnp.dot(sW2[...], g1.astype(bf16),
                                 preferred_element_type=f32) + sb2[...], 0.0)
        s = jnp.dot(sW3[...], g2.astype(bf16),
                    preferred_element_type=f32) + sb3[...]                # (c_out, k*npad)
        sout = s[:, 0:npad]
        for j in range(1, k):
            sout = jnp.maximum(sout, s[:, j * npad:(j + 1) * npad])

        # topic slot: identical column broadcast over all nodes (slot K only).
        topic_b = jnp.broadcast_to(topic, (topic_c, npad)).astype(bf16)
        t1 = jnp.maximum(jnp.dot(sW1t[...], topic_b,
                                 preferred_element_type=f32) + sb1[...], 0.0)
        t2 = jnp.maximum(jnp.dot(sW2[...], t1.astype(bf16),
                                 preferred_element_type=f32) + sb2[...], 0.0)
        t3 = jnp.dot(sW3[...], t2.astype(bf16),
                     preferred_element_type=f32) + sb3[...]
        sout = jnp.maximum(sout, t3)

        out_ref[0] = jnp.maximum(tout + idn + sout, 0.0)
    return kernel


def ego_fused_call(x_t, feat, identity, topic, p):
    b = x_t.shape[0]
    bf16 = jnp.bfloat16
    w = dict(
        tW1=p["tW1"].astype(bf16), tb1=p["tb1"].reshape(WIDTH, 1),
        tW2=p["tW2d"].astype(bf16), tb2=p["tb2"].reshape(WIDTH, 1),
        tW3=p["tW3"].astype(bf16), tb3=p["tb3"].reshape(C_OUT, 1),
        sW1n=p["sW1"][:, :C_IN].astype(bf16),
        sW1c=p["sW1"][:, C_IN:2 * C_IN].astype(bf16),
        sW1t=p["sW1"][:, 2 * C_IN:].astype(bf16),
        sb1=p["sb1"].reshape(WIDTH, 1),
        sW2=p["sW2d"].astype(bf16), sb2=p["sb2"].reshape(WIDTH, 1),
        sW3=p["sW3"].astype(bf16), sb3=p["sb3"].reshape(C_OUT, 1),
    )

    def full(*shape):
        return pl.BlockSpec(shape, lambda i: (0,) * len(shape))

    kern = make_ego_kernel(WIDTH, C_OUT, N_TAPS, K, NPAD, TOPIC_C)
    return pl.pallas_call(
        kern,
        out_shape=jax.ShapeDtypeStruct((b, C_OUT, NPAD), jnp.float32),
        grid=(b,),
        in_specs=[
            pl.BlockSpec((1, C_IN, N_TAPS * NPAD), lambda i: (i, 0, 0)),
            pl.BlockSpec((1, C_IN, K * NPAD), lambda i: (i, 0, 0)),
            pl.BlockSpec((1, C_IN, NPAD), lambda i: (i, 0, 0)),
            pl.BlockSpec((1, TOPIC_C, 1), lambda i: (i, 0, 0)),
            full(WIDTH, C_IN), full(WIDTH, 1),
            full(N_TAPS, WIDTH, WIDTH), full(WIDTH, 1),
            full(C_OUT, WIDTH), full(C_OUT, 1),
            full(WIDTH, C_IN), full(WIDTH, C_IN), full(WIDTH, TOPIC_C), full(WIDTH, 1),
            full(WIDTH, WIDTH), full(WIDTH, 1),
            full(C_OUT, WIDTH), full(C_OUT, 1),
        ],
        out_specs=pl.BlockSpec((1, C_OUT, NPAD), lambda i: (i, 0, 0)),
        compiler_params=pltpu.CompilerParams(dimension_semantics=("parallel",)),
    )(x_t, feat, identity, topic,
      w["tW1"], w["tb1"], w["tW2"], w["tb2"], w["tW3"], w["tb3"],
      w["sW1n"], w["sW1c"], w["sW1t"], w["sb1"], w["sW2"], w["sb2"], w["sW3"], w["sb3"])


# ----------------------------------------------------------------------------
# Host-side glue (index construction, gathers, lane padding)
# ----------------------------------------------------------------------------
def build_neighbor_idx(seg_lens, max_seg_length=MAX_SEG_LEN):
    """Exact port of the index-building loop in get_temporal_graph (local indices)."""
    batch_size, max_seg_num = seg_lens.shape
    neighbor_idx = []
    for i in range(batch_size):
        neighbor_idx.append([])
        last_valid = 0
        skip_seg = 0
        for j in range(max_seg_num):
            for kk in range(max_seg_length // 4):
                neighbor_idx[i].append([])
                idx = j * max_seg_length // 4 + kk
                if kk < math.ceil(seg_lens[i][j] / 4.0):
                    neighbor_idx[i][idx].append(last_valid)
                    neighbor_idx[i][idx].append(idx)
                    neighbor_idx[i][idx].append(idx)
                    last_valid = idx
                    if kk == 0 and j != 0:
                        neighbor_idx[i][skip_seg][2] = idx
                    if kk == math.ceil(seg_lens[i][j] / 4.0) - 1:
                        skip_seg = idx
                    else:
                        neighbor_idx[i][idx][2] = idx + 1
                else:
                    neighbor_idx[i][idx].append(idx)
                    neighbor_idx[i][idx].append(idx)
                    neighbor_idx[i][idx].append(idx)
    return np.array(neighbor_idx, dtype=np.int32)   # (B, N, 3) local indices


def ego_gcnext_forward(x, seg_lens_np, topic_features, params):
    """x: (B, C_IN, N) f32; seg_lens_np: (B, MAX_SEG_NUM) int; topic: (B, TOPIC_C, 1)."""
    b = x.shape[0]
    bf16 = jnp.bfloat16
    x_pad = jnp.pad(x, ((0, 0), (0, 0), (0, NPAD - N)))            # (B, C, NPAD) f32
    x_bf = x_pad.astype(bf16)
    x_nc = jnp.transpose(x_pad, (0, 2, 1))                         # (B, NPAD, C) f32

    # ---- temporal graph (get_temporal_graph): gather directly into (C, 3*NPAD)
    nb = build_neighbor_idx(seg_lens_np)                           # (B, N, 3)
    nb_pad = np.zeros((b, NPAD, 3), np.int32)
    nb_pad[:, :N, :] = nb
    nb_t = jnp.asarray(np.transpose(nb_pad, (0, 2, 1)))            # (B, 3, NPAD)
    # TODO(synk): gathers stay in the XLA glue; an in-kernel lane gather via
    # scalar-prefetched indices was skipped for lowering robustness.
    x_t = jax.vmap(lambda xb, ib: xb[:, ib])(x_bf, nb_t)           # (B, C, 3, NPAD)
    x_t = x_t.reshape(b, C_IN, N_TAPS * NPAD)

    # ---- knn graph feature (get_graph_feature, style=1)
    pdist = pairwise_distance(x_nc, x_pad)                         # (B, NPAD, NPAD), Pallas
    # TODO(synk): top-k has no clean Pallas TPU equivalent; use lax.top_k in glue.
    idx = jax.lax.top_k(pdist, K)[1]                               # (B, NPAD, K)
    idx_t = jnp.transpose(idx, (0, 2, 1))                          # (B, K, NPAD)
    feat = jax.vmap(lambda xb, ib: xb[:, ib])(x_bf, idx_t)         # (B, C, K, NPAD)
    feat = feat.reshape(b, C_IN, K * NPAD)

    out_pad = ego_fused_call(x_t, feat, x_pad, topic_features, params)  # (B, C_OUT, NPAD)
    return out_pad[:, :, :N], nb, idx[:, :N, :]


# ----------------------------------------------------------------------------
# Deterministic parameter init + grouped->dense weight embedding
# ----------------------------------------------------------------------------
def grouped_to_dense(w_grp):
    w = np.asarray(w_grp, dtype=np.float32)          # (WIDTH, GS)
    dense = np.zeros((WIDTH, WIDTH), np.float32)
    for o in range(WIDTH):
        g = o // GS
        dense[o, g * GS:(g + 1) * GS] = w[o]
    return jnp.asarray(dense)


def init_params(key):
    ks = jax.random.split(key, 12)
    nrm = lambda k, s: (0.1 * jax.random.normal(k, s)).astype(jnp.float32)
    tW2g = nrm(ks[2], (WIDTH, GS, 3))                # Conv2d(width, width, (1,3), groups)
    sW2g = nrm(ks[8], (WIDTH, GS))                   # Conv2d(width, width, 1, groups)
    return dict(
        tW1=nrm(ks[0], (WIDTH, C_IN)), tb1=nrm(ks[1], (WIDTH,)),
        tW2d=jnp.stack([grouped_to_dense(tW2g[:, :, j]) for j in range(3)], axis=0),
        tb2=nrm(ks[3], (WIDTH,)),
        tW3=nrm(ks[4], (C_OUT, WIDTH)), tb3=nrm(ks[5], (C_OUT,)),
        sW1=nrm(ks[6], (WIDTH, CIN2)), sb1=nrm(ks[7], (WIDTH,)),
        sW2d=grouped_to_dense(sW2g), sb2=nrm(ks[9], (WIDTH,)),
        sW3=nrm(ks[10], (C_OUT, WIDTH)), sb3=nrm(ks[11], (C_OUT,)),
    )


# ----------------------------------------------------------------------------
# Pure-JAX reference in the ORIGINAL formulation (zero-padded merged graph,
# per-slot convs, slot max), with the same bf16 matmul-operand casts.
# ----------------------------------------------------------------------------
def reference_forward(x, nb, idx, topic, p):
    b = x.shape[0]
    f32, bf16 = jnp.float32, jnp.bfloat16
    bf = lambda a: a.astype(bf16)
    relu = jax.nn.relu

    x_nt = jnp.transpose(x, (0, 2, 1))                                 # (B, N, C)
    xt = jax.vmap(lambda xb, ib: xb[ib])(x_nt, nb)                     # (B, N, 3, C)
    x_t = jnp.transpose(xt, (0, 3, 1, 2))                              # (B, C, N, 3)
    feat = jax.vmap(lambda xb, ib: xb[ib])(x_nt, idx)                  # (B, N, K, C)
    feat = jnp.transpose(feat, (0, 3, 1, 2))                           # (B, C, N, K)
    center = jnp.broadcast_to(x[:, :, :, None], (b, C_IN, N, K))
    xf = jnp.concatenate([feat, center,
                          jnp.zeros((b, TOPIC_C, N, K), f32)], axis=1)  # (B, CIN2, N, K)
    topic_slot = jnp.concatenate(
        [jnp.zeros((b, 2 * C_IN, N, 1), f32),
         jnp.broadcast_to(topic[:, :, None, :], (b, TOPIC_C, N, 1))], axis=1)
    merged = jnp.concatenate([xf, topic_slot], axis=3)                 # (B, CIN2, N, K+1)

    h1 = relu(jnp.einsum('oc,bcnt->bont', bf(p['tW1']), bf(x_t),
                         preferred_element_type=f32) + p['tb1'][None, :, None, None])
    h2 = relu(jnp.einsum('toc,bcnt->bon', bf(p['tW2d']), bf(h1),
                         preferred_element_type=f32) + p['tb2'][None, :, None])
    tout = jnp.einsum('oc,bcn->bon', bf(p['tW3']), bf(h2),
                      preferred_element_type=f32) + p['tb3'][None, :, None]

    g1 = relu(jnp.einsum('oc,bcns->bons', bf(p['sW1']), bf(merged),
                         preferred_element_type=f32) + p['sb1'][None, :, None, None])
    g2 = relu(jnp.einsum('oc,bcns->bons', bf(p['sW2d']), bf(g1),
                         preferred_element_type=f32) + p['sb2'][None, :, None, None])
    s = jnp.einsum('oc,bcns->bons', bf(p['sW3']), bf(g2),
                   preferred_element_type=f32) + p['sb3'][None, :, None, None]
    sout = jnp.max(s, axis=-1)
    return relu(tout + x + sout)


# ----------------------------------------------------------------------------
if __name__ == "__main__":
    key = jax.random.PRNGKey(0)
    k_x, k_t, k_p = jax.random.split(key, 3)

    x = jax.random.normal(k_x, (B, C_IN, N), dtype=jnp.float32)
    topic_features = jax.random.normal(k_t, (B, TOPIC_C, 1), dtype=jnp.float32)
    seg_lens_np = np.array([[37, 18], [50, 9]], dtype=np.int32)   # (B, MAX_SEG_NUM)

    params = init_params(k_p)

    out, nb, idx = ego_gcnext_forward(x, seg_lens_np, topic_features, params)
    out = jax.block_until_ready(out)

    ref = reference_forward(x, jnp.asarray(nb), idx, topic_features, params)
    np.testing.assert_allclose(np.asarray(out), np.asarray(ref), rtol=2e-2, atol=2e-2)
    assert out.shape == (B, C_OUT, N)

    print("KERNEL_OK")
</pallas_src>

<mosaic_0001>
module attributes {stable_mosaic.version = 11 : i64} {
  func.func @kernel(%arg0: i32, %arg1: memref<1x128x32xf32, #tpu.memory_space<vmem>>, %arg2: memref<1x32x128xf32, #tpu.memory_space<vmem>>, %arg3: memref<1x128x128xf32, #tpu.memory_space<vmem>>) attributes {dimension_semantics = [#tpu.dimension_semantics<parallel>], iteration_bounds = array<i64: 2>, scalar_prefetch = 0 : i64, scratch_operands = 0 : i64, tpu.core_type = #tpu.core_type<tc>, window_params = [{transform_indices = @transform_0, window_bounds = array<i64: 1, 128, 32>}, {transform_indices = @transform_1, window_bounds = array<i64: 1, 32, 128>}, {transform_indices = @transform_2, window_bounds = array<i64: 1, 128, 128>}]} {
    %c0 = arith.constant 0 : index
    %c0_0 = arith.constant 0 : index
    %c0_1 = arith.constant 0 : index
    %0 = vector.load %arg1[%c0, %c0_0, %c0_1] : memref<1x128x32xf32, #tpu.memory_space<vmem>>, vector<1x128x32xf32>
    %1 = vector.shape_cast %0 : vector<1x128x32xf32> to vector<128x32xf32>
    %c0_2 = arith.constant 0 : index
    %c0_3 = arith.constant 0 : index
    %c0_4 = arith.constant 0 : index
    %2 = vector.load %arg2[%c0_2, %c0_3, %c0_4] : memref<1x32x128xf32, #tpu.memory_space<vmem>>, vector<1x32x128xf32>
    %3 = vector.shape_cast %2 : vector<1x32x128xf32> to vector<32x128xf32>
    %cst = arith.constant dense<0.000000e+00> : vector<128x128xf32>
    %4 = tpu.matmul %1, %3, %cst {dimension_numbers = #tpu.dot_dimension_numbers<[1], [0], [0], [1], [0, 0, 1, 1], [], []>} : vector<128x32xf32>, vector<32x128xf32>, vector<128x128xf32> -> vector<128x128xf32>
    %5 = arith.mulf %3, %3 : vector<32x128xf32>
    %cst_5 = arith.constant dense<0.000000e+00> : vector<128xf32>
    %6 = vector.multi_reduction <add>, %5, %cst_5 [0] : vector<32x128xf32> to vector<128xf32>
    %7 = vector.shape_cast %6 : vector<128xf32> to vector<1x128xf32>
    %8 = arith.mulf %1, %1 : vector<128x32xf32>
    %cst_6 = arith.constant dense<0.000000e+00> : vector<128xf32>
    %9 = vector.multi_reduction <add>, %8, %cst_6 [1] : vector<128x32xf32> to vector<128xf32>
    %10 = vector.shape_cast %9 : vector<128xf32> to vector<128x1xf32>
    %cst_7 = arith.constant 2.000000e+00 : f32
    %11 = vector.broadcast %cst_7 : f32 to vector<128x128xf32>
    %12 = arith.mulf %11, %4 : vector<128x128xf32>
    %13 = vector.broadcast %7 : vector<1x128xf32> to vector<128x128xf32>
    %14 = arith.subf %12, %13 : vector<128x128xf32>
    %15 = vector.broadcast %10 : vector<128x1xf32> to vector<128x128xf32>
    %16 = arith.subf %14, %15 : vector<128x128xf32>
    %17 = tpu.iota {dimensions = array<i32: 1>} : vector<128x128xi32>
    %c100_i32 = arith.constant 100 : i32
    %18 = vector.broadcast %c100_i32 : i32 to vector<128x128xi32>
    %19 = arith.cmpi slt, %17, %18 : vector<128x128xi32>
    %cst_8 = arith.constant -1.000000e+30 : f32
    %20 = vector.broadcast %cst_8 : f32 to vector<128x128xf32>
    %21 = arith.select %19, %16, %20 : vector<128x128xi1>, vector<128x128xf32>
    %c0_9 = arith.constant 0 : index
    %c0_10 = arith.constant 0 : index
    %c0_11 = arith.constant 0 : index
    %22 = vector.load %arg3[%c0_9, %c0_10, %c0_11] : memref<1x128x128xf32, #tpu.memory_space<vmem>>, vector<1x128x128xf32>
    %23 = vector.shape_cast %22 : vector<1x128x128xf32> to vector<128x128xf32>
    %24 = vector.shape_cast %21 : vector<128x128xf32> to vector<1x128x128xf32>
    tpu.vector_store %arg3[%c0_9, %c0_10, %c0_11], %24 {strides = array<i32>} : memref<1x128x128xf32, #tpu.memory_space<vmem>>, vector<1x128x128xf32>,
    return
  }
  func.func @transform_0(%arg0: i32) -> (i32, i32, i32) {
    %c0_i32 = arith.constant 0 : i32
    %c0_i32_0 = arith.constant 0 : i32
    %c0_i32_1 = arith.constant 0 : i32
    return %arg0, %c0_i32, %c0_i32_0 : i32, i32, i32
  }
  func.func @transform_1(%arg0: i32) -> (i32, i32, i32) {
    %c0_i32 = arith.constant 0 : i32
    %c0_i32_0 = arith.constant 0 : i32
    %c0_i32_1 = arith.constant 0 : i32
    return %arg0, %c0_i32, %c0_i32_0 : i32, i32, i32
  }
  func.func @transform_2(%arg0: i32) -> (i32, i32, i32) {
    %c0_i32 = arith.constant 0 : i32
    %c0_i32_0 = arith.constant 0 : i32
    %c0_i32_1 = arith.constant 0 : i32
    return %arg0, %c0_i32, %c0_i32_0 : i32, i32, i32
  }
}

</mosaic_0001>

<llo_original>
// kernel: tpu_custom_call.1
$region0: #{tpu_custom_call.1}
  #allocation0 [shape = 'u32[]', space=smem, size = 0x4, offset = 0x4, fixed_abs, tag = 'smem constant byte address 0x4 - core index']
  #allocation1 [shape = 'u32[144,128]{1,0:T(1,128)}', space=vmem, size = 0x12000, scoped, tag = 'internal scratch']
  %s0 = inlined_call_operand.vmem [shape: f32[2,128,32], index: 0, kind: input, shape index: {}]
  %s1 = inlined_call_operand.vmem [shape: f32[2,32,128], index: 1, kind: input, shape index: {}]
  %s2 = inlined_call_operand.hbm [shape: f32[2,128,128], index: 2, kind: output, shape index: {}]
  %s3 = sld [smem:[#allocation0]]
  $region41: #{tpu_custom_call.1} parent=0
    _
  %s5 = ssub.s32 1, %s3
  %s6 = scalar_select 0, %s5, %s3
  $region1: #{tpu_custom_call.1} parent=0
    #allocation2 [shape = 'u8[131072]{0}', space=vmem, size = 0x20000, scoped, tag = 'output window, operand 0']
    #allocation3 [shape = 's32[2]{0}', space=sflag, size = 0x8, scoped, tag = 'scoped memory for tpu_custom_call.1']
    %7 = vsyncpa [#allocation3], 0
    %s8 = scalar_lea.sflag [#allocation3], 1
    %9 = vsyncpa %s8, 0
    loop: start=0, step=1, limit=4
    $region2: #{tpu_custom_call.1} parent=1 // loop_pre_header
      _
    $region3: #{tpu_custom_call.1} parent=1 // loop_header
      %s11 = sphi 0, %s15
      %p12 = scmp.ge.s32.totalorder %s11, 4
      %s21 = sphi 0, %s23
      %s24 = sphi 0, %s21
      %s25 = sphi 0, %s24
      %s41 = sphi 0, %s25
      %s47 = sphi 0, %s49
      %s50 = sphi 0, %s47
      %s51 = sphi 0, %s50
      %s67 = sphi 0, %s51
      %s73 = sphi 0, %s75
      %s76 = sphi 0, %s73
      %s77 = sphi 0, %s76
      %s93 = sphi 0, %s77
    $region4: #{tpu_custom_call.1} parent=1 // loop_header_branch
      %14 = sbr.rel (%p12) target = $region8
    $region5: #{tpu_custom_call.1} parent=1 // loop_body
      %s16 = ssub.s32 %s11, 1
      %s17 = ssub.s32 %s11, 2
      %s18 = sadd.s32 %s11, 1
      %s19 = ssub.s32 %s11, %s18
      %p20 = scmp.eq.s32.totalorder %s19, 0
      %s22 = sadd.s32 %s21, 1
      %s23 = scalar_select %p20, %s21, %s22
      %p26 = pneg %p20
      %p27 = scmp.eq.s32.totalorder %s11, 1
      %p28 = por %p26, %p27
      %p29 = scmp.ne.s32.totalorder %s21, %s24
      %p30 = scmp.eq.s32.totalorder %s11, 0
      %p31 = por %p29, %p30
      %p32 = scmp.ne.s32.totalorder %s21, %s24
      %p33 = scmp.eq.s32.totalorder %s16, 1
      %p34 = por %p32, %p33
      %p35 = scmp.ne.s32.totalorder %s24, %s25
      %p36 = scmp.eq.s32.totalorder %s16, 0
      %p37 = por %p35, %p36
      %p38 = scmp.ne.s32.totalorder %s24, %s25
      %p39 = scmp.eq.s32.totalorder %s17, 1
      %p40 = por %p38, %p39
      %p42 = scmp.ne.s32.totalorder %s25, %s41
      %p43 = scmp.eq.s32.totalorder %s17, 0
      %p44 = por %p42, %p43
      %s45 = ssub.s32 %s11, %s18
      %p46 = scmp.eq.s32.totalorder %s45, 0
      %s48 = sadd.s32 %s47, 1
      %s49 = scalar_select %p46, %s47, %s48
      %p52 = pneg %p46
      %p53 = scmp.eq.s32.totalorder %s11, 1
      %p54 = por %p52, %p53
      %p55 = scmp.ne.s32.totalorder %s47, %s50
      %p56 = scmp.eq.s32.totalorder %s11, 0
      %p57 = por %p55, %p56
      %p58 = scmp.ne.s32.totalorder %s47, %s50
      %p59 = scmp.eq.s32.totalorder %s16, 1
      %p60 = por %p58, %p59
      %p61 = scmp.ne.s32.totalorder %s50, %s51
      %p62 = scmp.eq.s32.totalorder %s16, 0
      %p63 = por %p61, %p62
      %p64 = scmp.ne.s32.totalorder %s50, %s51
      %p65 = scmp.eq.s32.totalorder %s17, 1
      %p66 = por %p64, %p65
      %p68 = scmp.ne.s32.totalorder %s51, %s67
      %p69 = scmp.eq.s32.totalorder %s17, 0
      %p70 = por %p68, %p69
      %s71 = ssub.s32 %s11, %s18
      %p72 = scmp.eq.s32.totalorder %s71, 0
      %s74 = sadd.s32 %s73, 1
      %s75 = scalar_select %p72, %s73, %s74
      %p78 = pneg %p72
      %p79 = scmp.eq.s32.totalorder %s11, 1
      %p80 = por %p78, %p79
      %p81 = scmp.ne.s32.totalorder %s73, %s76
      %p82 = scmp.eq.s32.totalorder %s11, 0
      %p83 = por %p81, %p82
      %p84 = scmp.ne.s32.totalorder %s73, %s76
      %p85 = scmp.eq.s32.totalorder %s16, 1
      %p86 = por %p84, %p85
      %p87 = scmp.ne.s32.totalorder %s76, %s77
      %p88 = scmp.eq.s32.totalorder %s16, 0
      %p89 = por %p87, %p88
      %p90 = scmp.ne.s32.totalorder %s76, %s77
      %p91 = scmp.eq.s32.totalorder %s17, 1
      %p92 = por %p90, %p91
      %p94 = scmp.ne.s32.totalorder %s77, %s93
      %p95 = scmp.eq.s32.totalorder %s17, 0
      %p96 = por %p94, %p95
      %p97 = scmp.le.s32.totalorder 1, %s11
      %p98 = scmp.lt.s32.totalorder %s11, 3
      %p99 = pnand %p97, %p98
      %p100 = pneg %p99
      // Predicated region
      $region9: #{tpu_custom_call.1} parent=5 // pred_check
        _
      $region10: #{tpu_custom_call.1} parent=5 // pred_check_branch
        %102 = sbr.rel (%p99) target = $region12
      $region11: #{tpu_custom_call.1} parent=5 // pred_region
        %s103 = ssub.s32 %s11, 1
      $region12: #{tpu_custom_call.1} parent=5 // pred_fallthru
        _
      %p104 = scmp.lt.s32.totalorder %s11, 2
      // Predicated region
      $region13: #{tpu_custom_call.1} parent=5 // pred_check
        %p105 = pneg %p104
      $region14: #{tpu_custom_call.1} parent=5 // pred_check_branch
        %107 = sbr.rel (%p105) target = $region16
      $region15: #{tpu_custom_call.1} parent=5 // pred_region
        // Predicated region
        $region17: #{tpu_custom_call.1} parent=15 // pred_check
          %p108 = pneg %p31
        $region18: #{tpu_custom_call.1} parent=15 // pred_check_branch
          %110 = sbr.rel (%p108) target = $region20
        $region19: #{tpu_custom_call.1} parent=15 // pred_region
          %p111 = scmp.lt.s32.totalorder %s11, 1
          %s112 = scalar_select %p111, %s11, 1
          %s113 = smul.addr %s112, 16
          %s114 = smul.addr %s113, 8
          %s115 = scalar_lea.vmem %s0, %s114
        $region20: #{tpu_custom_call.1} parent=15 // pred_fallthru
          _
        // Predicated region
        $region21: #{tpu_custom_call.1} parent=15 // pred_check
          %p116 = pneg %p57
        $region22: #{tpu_custom_call.1} parent=15 // pred_check_branch
          %118 = sbr.rel (%p116) target = $region24
        $region23: #{tpu_custom_call.1} parent=15 // pred_region
          %p119 = scmp.lt.s32.totalorder %s11, 1
          %s120 = scalar_select %p119, %s11, 1
          %s121 = smul.addr %s120, 4
          %s122 = smul.addr %s121, 8
          %s123 = scalar_lea.vmem %s1, %s122
        $region24: #{tpu_custom_call.1} parent=15 // pred_fallthru
          _
      $region16: #{tpu_custom_call.1} parent=5 // pred_fallthru
        _
      %p124 = scmp.le.s32.totalorder 1, %s11
      %p125 = scmp.lt.s32.totalorder %s11, 3
      %p126 = pnand %p124, %p125
      %p127 = pneg %p126
      // Predicated region
      $region25: #{tpu_custom_call.1} parent=5 // pred_check
        _
      $region26: #{tpu_custom_call.1} parent=5 // pred_check_branch
        %129 = sbr.rel (%p126) target = $region28
      $region27: #{tpu_custom_call.1} parent=5 // pred_region
        %s130 = ssub.s32 %s11, 1
        %p131 = scmp.lt.s32.totalorder %s16, 1
        %s132 = scalar_select %p131, %s16, 1
        %s133 = smul.addr %s132, 16
        %s134 = smul.addr %s133, 8
        %s135 = scalar_lea.vmem %s0, %s134
        %p136 = pneg %p37
        %p137 = pneg %p34
        %p138 = scmp.lt.s32.totalorder %s16, 1
        %s139 = scalar_select %p138, %s16, 1
        %s140 = smul.addr %s139, 4
        %s141 = smul.addr %s140, 8
        %s142 = scalar_lea.vmem %s1, %s141
        %p143 = pneg %p63
        %p144 = pneg %p60
        %p145 = pneg %p89
        %p146 = pneg %p86
        %s147 = sand.u32 %s76, 1
        %s148 = scalar_lea.sflag [#allocation3], %s147
        %s149 = sand.u32 %s76, 1
        %s150 = smul.addr %s149, 128
        %s151 = scalar_lea.vmem [#allocation2], %s150
        %p152 = scmp.lt.s32.totalorder %s16, 1
        %s153 = scalar_select %p152, %s16, 1
        %s154 = smul.addr %s153, 16
        %s155 = smul.addr %s154, 8
        %s156 = scalar_lea.vmem %s0, %s155
        %p157 = scmp.lt.s32.totalorder %s16, 1
        %s158 = scalar_select %p157, %s16, 1
        %s159 = smul.addr %s158, 4
        %s160 = smul.addr %s159, 8
        %s161 = scalar_lea.vmem %s1, %s160
        %v162 = vld [vmem:[%s156] sm:$0xff]
        %v163 = vld [vmem:[%s156 + $0x8] sm:$0xff]
        %v164 = vld [vmem:[%s156 + $0x10] sm:$0xff]
        %v165 = vld [vmem:[%s156 + $0x18] sm:$0xff]
        %v166 = vld [vmem:[%s156 + $0x20] sm:$0xff]
        %v167 = vld [vmem:[%s156 + $0x28] sm:$0xff]
        %v168 = vld [vmem:[%s156 + $0x30] sm:$0xff]
        %v169 = vld [vmem:[%s156 + $0x38] sm:$0xff]
        %v170 = vld [vmem:[%s156 + $0x40] sm:$0xff]
        %v171 = vld [vmem:[%s156 + $0x48] sm:$0xff]
        %v172 = vld [vmem:[%s156 + $0x50] sm:$0xff]
        %v173 = vld [vmem:[%s156 + $0x58] sm:$0xff]
        %v174 = vld [vmem:[%s156 + $0x60] sm:$0xff]
        %v175 = vld [vmem:[%s156 + $0x68] sm:$0xff]
        %v176 = vld [vmem:[%s156 + $0x70] sm:$0xff]
        %v177 = vld [vmem:[%s156 + $0x78] sm:$0xff]
        %v178 = vld [vmem:[%s161] sm:$0xff]
        %v179 = vld [vmem:[%s161 + $0x8] sm:$0xff]
        %v180 = vld [vmem:[%s161 + $0x10] sm:$0xff]
        %v181 = vld [vmem:[%s161 + $0x18] sm:$0xff]
        %vm182 = vcmask 261120
        %v184 = vsel %vm182, %v162, 0
        %v187 = vsel %vm182, %v163, 0
        %v190 = vsel %vm182, %v164, 0
        %v193 = vsel %vm182, %v165, 0
        %v196 = vsel %vm182, %v166, 0
        %v199 = vsel %vm182, %v167, 0
        %v202 = vsel %vm182, %v168, 0
        %v205 = vsel %vm182, %v169, 0
        %v208 = vsel %vm182, %v170, 0
        %v211 = vsel %vm182, %v171, 0
        %v214 = vsel %vm182, %v172, 0
        %v217 = vsel %vm182, %v173, 0
        %v220 = vsel %vm182, %v174, 0
        %v223 = vsel %vm182, %v175, 0
        %v226 = vsel %vm182, %v176, 0
        %v229 = vsel %vm182, %v177, 0
        %231 = vmatprep.subr.mxu0 0.0
        %232 = vmatpush1.msra.mxu0 %v178
        %233 = vmatprep.subr.mxu0 0.0
        %234 = vmatpush1.msra.mxu0 %v179
        %235 = vmatprep.subr.mxu0 0.0
        %236 = vmatpush1.msra.mxu0 %v180
        %237 = vmatprep.subr.mxu0 0.0
        %238 = vmatpush1.msra.mxu0 %v181
        %239 = vmatprep.subr.mxu0 0.0
        %240 = vmatpush1.msra.mxu0 0.0
        %241 = vmatprep.subr.mxu0 0.0
        %242 = vmatpush1.msra.mxu0 0.0
        %243 = vmatprep.subr.mxu0 0.0
        %244 = vmatpush1.msra.mxu0 0.0
        %245 = vmatprep.subr.mxu0 0.0
        %246 = vmatpush1.msra.mxu0 0.0
        %247 = vmatprep.subr.mxu0 0.0
        %248 = vmatpush1.msra.mxu0 0.0
        %249 = vmatprep.subr.mxu0 0.0
        %250 = vmatpush1.msra.mxu0 0.0
        %251 = vmatprep.subr.mxu0 0.0
        %252 = vmatpush1.msra.mxu0 0.0
        %253 = vmatprep.subr.mxu0 0.0
        %254 = vmatpush1.msra.mxu0 0.0
        %255 = vmatprep.subr.mxu0 0.0
        %256 = vmatpush1.msra.mxu0 0.0
        %257 = vmatprep.subr.mxu0 0.0
        %258 = vmatpush1.msra.mxu0 0.0
        %259 = vmatprep.subr.mxu0 0.0
        %260 = vmatpush1.msra.mxu0 0.0
        %261 = vmatprep.subr.mxu0 0.0
        %262 = vmatpush1.msra.mxu0 0.0
        %263 = vmatprep.subr.mxu0 0.0
        %264 = vmatpush1.msra.mxu0 0.0
        %265 = vmatprep.subr.mxu0 0.0
        %266 = vmatpush1.msra.mxu0 0.0
        %267 = vmatprep.subr.mxu0 0.0
        %268 = vmatpush1.msra.mxu0 0.0
        %269 = vmatprep.subr.mxu0 0.0
        %270 = vmatpush1.msra.mxu0 0.0
        %271 = vmatprep.subr.mxu0 0.0
        %272 = vmatpush1.msra.mxu0 0.0
        %273 = vmatprep.subr.mxu0 0.0
        %274 = vmatpush1.msra.mxu0 0.0
        %275 = vmatprep.subr.mxu0 0.0
        %276 = vmatpush1.msra.mxu0 0.0
        %277 = vmatprep.subr.mxu0 0.0
        %278 = vmatpush1.msra.mxu0 0.0
        %279 = vmatprep.subr.mxu0 0.0
        %280 = vmatpush1.msra.mxu0 0.0
        %281 = vmatprep.subr.mxu0 0.0
        %282 = vmatpush1.msra.mxu0 0.0
        %283 = vmatprep.subr.mxu0 0.0
        %284 = vmatpush1.msra.mxu0 0.0
        %285 = vmatprep.subr.mxu0 0.0
        %286 = vmatpush1.msra.mxu0 0.0
        %287 = vmatprep.subr.mxu0 0.0
        %288 = vmatpush1.msra.mxu0 0.0
        %289 = vmatprep.subr.mxu0 0.0
        %290 = vmatpush1.msra.mxu0 0.0
        %291 = vmatprep.subr.mxu0 0.0
        %292 = vmatpush1.msra.mxu0 0.0
        %293 = vmatprep.subr.mxu0 0.0
        %294 = vmatpush1.msra.mxu0 0.0
        %295 = vmatprep.mubr.f32.mxu0 0.0
        %296 = vmatmul.mubr.f32.gmra.mrb[0].mxu0 %v184
        %v297 = vpop.f32.mrb[0].mxu0
        %v298 = vadd.f32 0.0, %v297
        %v299 = vpop.f32.mrb[0].mxu0
        %300 = vmatprep.mubr.f32.mxu0 0.0
        %301 = vmatmul.mubr.f32.gmra.mrb[0].mxu0 %v187
        %v302 = vpop.f32.mrb[0].mxu0
        %v303 = vadd.f32 0.0, %v302
        %v304 = vpop.f32.mrb[0].mxu0
        %305 = vmatprep.mubr.f32.mxu0 0.0
        %306 = vmatmul.mubr.f32.gmra.mrb[0].mxu0 %v190
        %v307 = vpop.f32.mrb[0].mxu0
        %v308 = vadd.f32 0.0, %v307
        %v309 = vpop.f32.mrb[0].mxu0
        %310 = vmatprep.mubr.f32.mxu0 0.0
        %311 = vmatmul.mubr.f32.gmra.mrb[0].mxu0 %v193
        %v312 = vpop.f32.mrb[0].mxu0
        %v313 = vadd.f32 0.0, %v312
        %v314 = vpop.f32.mrb[0].mxu0
        %315 = vmatprep.mubr.f32.mxu0 0.0
        %316 = vmatmul.mubr.f32.gmra.mrb[0].mxu0 %v196
        %v317 = vpop.f32.mrb[0].mxu0
        %v318 = vadd.f32 0.0, %v317
        %v319 = vpop.f32.mrb[0].mxu0
        %320 = vmatprep.mubr.f32.mxu0 0.0
        %321 = vmatmul.mubr.f32.gmra.mrb[0].mxu0 %v199
        %v322 = vpop.f32.mrb[0].mxu0
        %v323 = vadd.f32 0.0, %v322
        %v324 = vpop.f32.mrb[0].mxu0
        %325 = vmatprep.mubr.f32.mxu0 0.0
        %326 = vmatmul.mubr.f32.gmra.mrb[0].mxu0 %v202
        %v327 = vpop.f32.mrb[0].mxu0
        %v328 = vadd.f32 0.0, %v327
        %v329 = vpop.f32.mrb[0].mxu0
        %330 = vmatprep.mubr.f32.mxu0 0.0
        %331 = vmatmul.mubr.f32.gmra.mrb[0].mxu0 %v205
        %v332 = vpop.f32.mrb[0].mxu0
        %v333 = vadd.f32 0.0, %v332
        %v334 = vpop.f32.mrb[0].mxu0
        %335 = vmatprep.mubr.f32.mxu0 0.0
        %336 = vmatmul.mubr.f32.gmra.mrb[0].mxu0 %v208
        %v337 = vpop.f32.mrb[0].mxu0
        %v338 = vadd.f32 0.0, %v337
        %v339 = vpop.f32.mrb[0].mxu0
        %340 = vmatprep.mubr.f32.mxu0 0.0
        %341 = vmatmul.mubr.f32.gmra.mrb[0].mxu0 %v211
        %v342 = vpop.f32.mrb[0].mxu0
        %v343 = vadd.f32 0.0, %v342
        %v344 = vpop.f32.mrb[0].mxu0
        %345 = vmatprep.mubr.f32.mxu0 0.0
        %346 = vmatmul.mubr.f32.gmra.mrb[0].mxu0 %v214
        %v347 = vpop.f32.mrb[0].mxu0
        %v348 = vadd.f32 0.0, %v347
        %v349 = vpop.f32.mrb[0].mxu0
        %350 = vmatprep.mubr.f32.mxu0 0.0
        %351 = vmatmul.mubr.f32.gmra.mrb[0].mxu0 %v217
        %v352 = vpop.f32.mrb[0].mxu0
        %v353 = vadd.f32 0.0, %v352
        %v354 = vpop.f32.mrb[0].mxu0
        %355 = vmatprep.mubr.f32.mxu0 0.0
        %356 = vmatmul.mubr.f32.gmra.mrb[0].mxu0 %v220
        %v357 = vpop.f32.mrb[0].mxu0
        %v358 = vadd.f32 0.0, %v357
        %v359 = vpop.f32.mrb[0].mxu0
        %360 = vmatprep.mubr.f32.mxu0 0.0
        %361 = vmatmul.mubr.f32.gmra.mrb[0].mxu0 %v223
        %v362 = vpop.f32.mrb[0].mxu0
        %v363 = vadd.f32 0.0, %v362
        %v364 = vpop.f32.mrb[0].mxu0
        %365 = vmatprep.mubr.f32.mxu0 0.0
        %366 = vmatmul.mubr.f32.gmra.mrb[0].mxu0 %v226
        %v367 = vpop.f32.mrb[0].mxu0
        %v368 = vadd.f32 0.0, %v367
        %v369 = vpop.f32.mrb[0].mxu0
        %370 = vmatprep.mubr.f32.mxu0 0.0
        %371 = vmatmul.mubr.f32.gmra.mrb[0].mxu0 %v229
        %v372 = vpop.f32.mrb[0].mxu0
        %v373 = vadd.f32 0.0, %v372
        %v374 = vpop.f32.mrb[0].mxu0
        %375 = vdwg.mxu0
        %v376 = vmul.f32 %v178, %v178
        %v377 = vmul.f32 %v179, %v179
        %v378 = vmul.f32 %v180, %v180
        %v379 = vmul.f32 %v181, %v181
        %v380 = vadd.f32 %v376, %v377
        %v381 = vadd.f32 %v380, %v378
        %v382 = vadd.f32 %v381, %v379
        %v383 = vrot.slane %v382, 4
        %v384 = vadd.f32 %v382, %v383
        %v385 = vrot.slane %v384, 2
        %v386 = vadd.f32 %v384, %v385
        %v387 = vrot.slane %v386, 1
        %v388 = vadd.f32 %v386, %v387
        %v389 = vmul.f32 %v162, %v162
        %v390 = vmul.f32 %v163, %v163
        %v391 = vmul.f32 %v164, %v164
        %v392 = vmul.f32 %v165, %v165
        %v393 = vmul.f32 %v166, %v166
        %v394 = vmul.f32 %v167, %v167
        %v395 = vmul.f32 %v168, %v168
        %v396 = vmul.f32 %v169, %v169
        %v397 = vmul.f32 %v170, %v170
        %v398 = vmul.f32 %v171, %v171
        %v399 = vmul.f32 %v172, %v172
        %v400 = vmul.f32 %v173, %v173
        %v401 = vmul.f32 %v174, %v174
        %v402 = vmul.f32 %v175, %v175
        %v403 = vmul.f32 %v176, %v176
        %v404 = vmul.f32 %v177, %v177
        %v405 = vsel %vm182, %v389, 0.0
        %406 = vadd.xlane.f32.xlu0 %v405
        %v407 = vpop.xlane.xlu0 %406
        %v408 = vsel %vm182, %v390, 0.0
        %409 = vadd.xlane.f32.xlu0 %v408
        %v410 = vpop.xlane.xlu0 %409
        %v411 = vsel %vm182, %v391, 0.0
        %412 = vadd.xlane.f32.xlu0 %v411
        %v413 = vpop.xlane.xlu0 %412
        %v414 = vsel %vm182, %v392, 0.0
        %415 = vadd.xlane.f32.xlu0 %v414
        %v416 = vpop.xlane.xlu0 %415
        %v417 = vsel %vm182, %v393, 0.0
        %418 = vadd.xlane.f32.xlu0 %v417
        %v419 = vpop.xlane.xlu0 %418
        %v420 = vsel %vm182, %v394, 0.0
        %421 = vadd.xlane.f32.xlu0 %v420
        %v422 = vpop.xlane.xlu0 %421
        %v423 = vsel %vm182, %v395, 0.0
        %424 = vadd.xlane.f32.xlu0 %v423
        %v425 = vpop.xlane.xlu0 %424
        %v426 = vsel %vm182, %v396, 0.0
        %427 = vadd.xlane.f32.xlu0 %v426
        %v428 = vpop.xlane.xlu0 %427
        %v429 = vsel %vm182, %v397, 0.0
        %430 = vadd.xlane.f32.xlu0 %v429
        %v431 = vpop.xlane.xlu0 %430
        %v432 = vsel %vm182, %v398, 0.0
        %433 = vadd.xlane.f32.xlu0 %v432
        %v434 = vpop.xlane.xlu0 %433
        %v435 = vsel %vm182, %v399, 0.0
        %436 = vadd.xlane.f32.xlu0 %v435
        %v437 = vpop.xlane.xlu0 %436
        %v438 = vsel %vm182, %v400, 0.0
        %439 = vadd.xlane.f32.xlu0 %v438
        %v440 = vpop.xlane.xlu0 %439
        %v441 = vsel %vm182, %v401, 0.0
        %442 = vadd.xlane.f32.xlu0 %v441
        %v443 = vpop.xlane.xlu0 %442
        %v444 = vsel %vm182, %v402, 0.0
        %445 = vadd.xlane.f32.xlu0 %v444
        %v446 = vpop.xlane.xlu0 %445
        %v447 = vsel %vm182, %v403, 0.0
        %448 = vadd.xlane.f32.xlu0 %v447
        %v449 = vpop.xlane.xlu0 %448
        %v450 = vsel %vm182, %v404, 0.0
        %451 = vadd.xlane.f32.xlu0 %v450
        %v452 = vpop.xlane.xlu0 %451
        %v453 = vmul.f32 %v298, 2.0
        %v454 = vmul.f32 %v303, 2.0
        %v455 = vmul.f32 %v308, 2.0
        %v456 = vmul.f32 %v313, 2.0
        %v457 = vmul.f32 %v318, 2.0
        %v458 = vmul.f32 %v323, 2.0
        %v459 = vmul.f32 %v328, 2.0
        %v460 = vmul.f32 %v333, 2.0
        %v461 = vmul.f32 %v338, 2.0
        %v462 = vmul.f32 %v343, 2.0
        %v463 = vmul.f32 %v348, 2.0
        %v464 = vmul.f32 %v353, 2.0
        %v465 = vmul.f32 %v358, 2.0
        %v466 = vmul.f32 %v363, 2.0
        %v467 = vmul.f32 %v368, 2.0
        %v468 = vmul.f32 %v373, 2.0
        %v469 = vsub.f32 %v453, %v388
        %v470 = vsub.f32 %v454, %v388
        %v471 = vsub.f32 %v455, %v388
        %v472 = vsub.f32 %v456, %v388
        %v473 = vsub.f32 %v457, %v388
        %v474 = vsub.f32 %v458, %v388
        %v475 = vsub.f32 %v459, %v388
        %v476 = vsub.f32 %v460, %v388
        %v477 = vsub.f32 %v461, %v388
        %v478 = vsub.f32 %v462, %v388
        %v479 = vsub.f32 %v463, %v388
        %v480 = vsub.f32 %v464, %v388
        %v481 = vsub.f32 %v465, %v388
        %v482 = vsub.f32 %v466, %v388
        %v483 = vsub.f32 %v467, %v388
        %v484 = vsub.f32 %v468, %v388
        %v485 = vsub.f32 %v469, %v407
        %v486 = vsub.f32 %v470, %v410
        %v487 = vsub.f32 %v471, %v413
        %v488 = vsub.f32 %v472, %v416
        %v489 = vsub.f32 %v473, %v419
        %v490 = vsub.f32 %v474, %v422
        %v491 = vsub.f32 %v475, %v425
        %v492 = vsub.f32 %v476, %v428
        %v493 = vsub.f32 %v477, %v431
        %v494 = vsub.f32 %v478, %v434
        %v495 = vsub.f32 %v479, %v437
        %v496 = vsub.f32 %v480, %v440
        %v497 = vsub.f32 %v481, %v443
        %v498 = vsub.f32 %v482, %v446
        %v499 = vsub.f32 %v483, %v449
        %v500 = vsub.f32 %v484, %v452
        %v501 = vlaneseq
        %v502 = vand.u32 %v501, 127
        %vm503 = vcmp.lt.s32.totalorder %v502, 100
        %v504 = vsel %vm503, %v485, -1e+30
        %v505 = vsel %vm503, %v486, -1e+30
        %v506 = vsel %vm503, %v487, -1e+30
        %v507 = vsel %vm503, %v488, -1e+30
        %v508 = vsel %vm503, %v489, -1e+30
        %v509 = vsel %vm503, %v490, -1e+30
        %v510 = vsel %vm503, %v491, -1e+30
        %v511 = vsel %vm503, %v492, -1e+30
        %v512 = vsel %vm503, %v493, -1e+30
        %v513 = vsel %vm503, %v494, -1e+30
        %v514 = vsel %vm503, %v495, -1e+30
        %v515 = vsel %vm503, %v496, -1e+30
        %v516 = vsel %vm503, %v497, -1e+30
        %v517 = vsel %vm503, %v498, -1e+30
        %v518 = vsel %vm503, %v499, -1e+30
        %v519 = vsel %vm503, %v500, -1e+30
        %520 = vst [vmem:[%s151] sm:$0xff] %v504
        %521 = vst [vmem:[%s151 + $0x8] sm:$0xff] %v505
        %522 = vst [vmem:[%s151 + $0x10] sm:$0xff] %v506
        %523 = vst [vmem:[%s151 + $0x18] sm:$0xff] %v507
        %524 = vst [vmem:[%s151 + $0x20] sm:$0xff] %v508
        %525 = vst [vmem:[%s151 + $0x28] sm:$0xff] %v509
        %526 = vst [vmem:[%s151 + $0x30] sm:$0xff] %v510
        %527 = vst [vmem:[%s151 + $0x38] sm:$0xff] %v511
        %528 = vst [vmem:[%s151 + $0x40] sm:$0xff] %v512
        %529 = vst [vmem:[%s151 + $0x48] sm:$0xff] %v513
        %530 = vst [vmem:[%s151 + $0x50] sm:$0xff] %v514
        %531 = vst [vmem:[%s151 + $0x58] sm:$0xff] %v515
        %532 = vst [vmem:[%s151 + $0x60] sm:$0xff] %v516
        %533 = vst [vmem:[%s151 + $0x68] sm:$0xff] %v517
        %534 = vst [vmem:[%s151 + $0x70] sm:$0xff] %v518
        %535 = vst [vmem:[%s151 + $0x78] sm:$0xff] %v519
        %s536 = sand.u32 %s76, 1
        %s537 = scalar_lea.sflag [#allocation3], %s536
        %s538 = sand.u32 %s76, 1
        %s539 = smul.addr %s538, 128
        %s540 = scalar_lea.vmem [#allocation2], %s539
        // Predicated region
        $region29: #{tpu_custom_call.1} parent=27 // pred_check
          %p541 = pneg %p86
        $region30: #{tpu_custom_call.1} parent=27 // pred_check_branch
          %543 = sbr.rel (%p541) target = $region32
        $region31: #{tpu_custom_call.1} parent=27 // pred_region
          %s545 = ssub.s32 2048, 2048
          %546 = vsyncadd %s537, %s545
          %s547 = smul.addr %s16, 16
          %s548 = smul.addr %s547, 128
          %s549 = scalar_lea.hbm %s2, %s548
          %s550 = sshll.u32 %s540, 4
          %s551 = int_to_ptr.vmem [resolvable:$true] %s550
          %556 = dma.vmem_to_hbm [thread:$0]  %s551, 2048, %s549, %s537, 128, 128, 8
        $region32: #{tpu_custom_call.1} parent=27 // pred_fallthru
          _
      $region28: #{tpu_custom_call.1} parent=5 // pred_fallthru
        _
      %p557 = scmp.le.s32.totalorder 2, %s11
      // Predicated region
      $region33: #{tpu_custom_call.1} parent=5 // pred_check
        %p558 = pneg %p557
      $region34: #{tpu_custom_call.1} parent=5 // pred_check_branch
        %560 = sbr.rel (%p558) target = $region36
      $region35: #{tpu_custom_call.1} parent=5 // pred_region
        %s561 = ssub.s32 %s11, 2
        // Predicated region
        $region37: #{tpu_custom_call.1} parent=35 // pred_check
          %p562 = pneg %p92
        $region38: #{tpu_custom_call.1} parent=35 // pred_check_branch
          %564 = sbr.rel (%p562) target = $region40
        $region39: #{tpu_custom_call.1} parent=35 // pred_region
          %s565 = sand.u32 %s77, 1
          %s566 = scalar_lea.sflag [#allocation3], %s565
          %s567 = sand.u32 %s77, 1
          %s568 = smul.addr %s567, 128
          %s569 = scalar_lea.vmem [#allocation2], %s568
          %570 = dma.done %s566, 2048
        $region40: #{tpu_custom_call.1} parent=35 // pred_fallthru
          _
      $region36: #{tpu_custom_call.1} parent=5 // pred_fallthru
        _
    $region6: #{tpu_custom_call.1} parent=1 // loop_footer
      %s15 = sadd.s32 1, %s11
    $region7: #{tpu_custom_call.1} parent=1 // loop_footer_branch
      %10 = sbr.rel target = $region3
    $region8: #{tpu_custom_call.1} parent=1 // loop_exit
      _
    %571 = vsyncpa [#allocation3], 1
    %s572 = scalar_lea.sflag [#allocation3], 1
    %573 = vsyncpa %s572, 1

</llo_original>
